<compile_context>
chip_gen: v6e
topology: v6e:2x2x1
jax: 0.10.0
libtpu: 0.0.40
codegen_flags: <defaults>
</compile_context>

<pallas_src>
import jax
import jax.numpy as jnp
from jax.experimental import pallas as pl
from jax.experimental.pallas import tpu as pltpu

_LANE = 128
_TILE_BYTES = 8 << 20        # per-grid-step (in + out) byte budget, per buffer set
_MAX_ROWS = 16384            # hard cap on rows per tile
_MIN_PALLAS_ELEMS = 1024     # below this, let XLA fuse a plain astype


def _cast_kernel(x_ref, o_ref):
    # elementwise dtype cast to float32 (torch.tensor(x, dtype=torch.float))
    o_ref[...] = x_ref[...].astype(jnp.float32)


def _cost(n_elems, in_dtype):
    in_bytes = jnp.dtype(in_dtype).itemsize
    return pl.CostEstimate(
        flops=0,
        transcendentals=0,
        bytes_accessed=int(n_elems) * (in_bytes + 4),
    )


def _vmem_limit_bytes(row_tile, lane, in_itemsize):
    # Double-buffered input + output footprint, plus headroom; capped well
    # below v7x's 64 MiB physical VMEM.
    footprint = 2 * row_tile * lane * (in_itemsize + 4)
    return int(min(max(footprint + (4 << 20), 16 << 20), 56 << 20))


def _row_tile_from_budget(n_rows, lane, in_itemsize, row_multiple):
    """Rows per tile so that (in + out) bytes per step ~= _TILE_BYTES."""
    bytes_per_row = max(lane * (in_itemsize + 4), 1)
    rows = _TILE_BYTES // bytes_per_row
    rows = max(row_multiple, (rows // row_multiple) * row_multiple)
    rows = min(rows, _MAX_ROWS)
    if n_rows <= rows:
        # Single full-extent block (block dims == array dims bypass the
        # (8,128) divisibility rule) — no padding, no partial-block masking.
        return n_rows
    return rows


def _pallas_cast_tiled(x2d):
    """x2d: (R, L) 2-D view of any numeric dtype -> float32.

    Works for the lane-dense main path (L == 128) and the ragged fallback
    (L == full last dim). The leading dim is tiled in multiples of 8 (or the
    full extent when it fits in one tile) so BlockSpec double-buffering
    overlaps the HBM->VMEM DMA of tile i+1 with the cast/store of tile i.
    """
    R, L = x2d.shape
    itemsize = jnp.dtype(x2d.dtype).itemsize
    # Lane-dense path uses big 512-row-aligned tiles; ragged path uses
    # 8-row-aligned tiles with the full last dim.
    row_multiple = 512 if L == _LANE else 8
    row_tile = _row_tile_from_budget(R, L, itemsize, row_multiple)
    grid = (pl.cdiv(R, row_tile),)
    return pl.pallas_call(
        _cast_kernel,
        out_shape=jax.ShapeDtypeStruct((R, L), jnp.float32),
        grid_spec=pltpu.PrefetchScalarGridSpec(
            num_scalar_prefetch=0,
            grid=grid,
            in_specs=[pl.BlockSpec((row_tile, L), lambda i: (i, 0))],
            out_specs=pl.BlockSpec((row_tile, L), lambda i: (i, 0)),
        ),
        compiler_params=pltpu.CompilerParams(
            dimension_semantics=("parallel",),
            vmem_limit_bytes=_vmem_limit_bytes(row_tile, L, itemsize),
        ),
        cost_estimate=_cost(R * L, x2d.dtype),
    )(x2d)


class ActionHead:
    """JAX/Pallas port of actionHead (adaptive action predictor stub)."""

    def __init__(self, input_shape, action_space):
        self.input_shape = input_shape
        self.action_space = action_space
        # NOTE: the reference __init__ defines no weights; nothing to init.

    def preprocess(self, x):
        # Matches torch.tensor(x, dtype=torch.float): elementwise float32 cast.
        x = jnp.asarray(x)

        # Already float32: the kernel would be a pure HBM round-trip for zero
        # work — return as-is (mirrors torch, which returns tensors untouched).
        if x.dtype == jnp.float32:
            return x

        orig_shape = x.shape
        n = x.size
        # Tiny / degenerate inputs: launch overhead dominates; let XLA fuse.
        if n == 0 or x.ndim == 0 or n < _MIN_PALLAS_ELEMS:
            return x.astype(jnp.float32)

        if n % _LANE == 0:
            # Lane-dense (R, 128) view: reshape of a contiguous array is a
            # metadata-only op (no extra HBM traffic), no padding needed.
            x2d = x.reshape(-1, _LANE)
        else:
            # Ragged size: keep the full last dim, tile the leading dim.
            last = orig_shape[-1] if x.ndim >= 2 else n
            x2d = x.reshape(-1, last)

        y2d = _pallas_cast_tiled(x2d)
        return y2d.reshape(orig_shape)

    def forward(self, x, **kwargs):
        # TODO(synk): reference forward() body is `pass` — no compute to
        # translate; returning None matches the reference semantics exactly.
        return None

    def __call__(self, x, **kwargs):
        return self.forward(x, **kwargs)


if __name__ == "__main__":
    key = jax.random.PRNGKey(0)
    # small NCHW input consistent with an image-like input_shape
    batch, channels, spatial = 2, 4, 16
    x = jax.random.normal(
        key, (batch, channels, spatial, spatial)).astype(jnp.bfloat16)

    head = ActionHead(input_shape=(channels, spatial, spatial), action_space=6)

    # main path: lane-dense tiled cast kernel (2048 elems, divisible by 128)
    pre = jax.block_until_ready(head.preprocess(x))
    assert pre.dtype == jnp.float32
    assert pre.shape == (batch, channels, spatial, spatial)
    ref = jnp.asarray(x).astype(jnp.float32)
    assert bool(jnp.allclose(pre, ref)), "preprocess cast mismatch"

    # ragged path: size not divisible by 128, tiled along the leading dim
    x_ragged = jax.random.normal(
        jax.random.PRNGKey(1), (17, 33, 9)).astype(jnp.bfloat16)
    pre_r = jax.block_until_ready(head.preprocess(x_ragged))
    assert pre_r.dtype == jnp.float32 and pre_r.shape == (17, 33, 9)
    assert bool(jnp.allclose(pre_r, jnp.asarray(x_ragged).astype(jnp.float32)))

    # float32 short-circuit: no kernel, returned as-is
    x_f32 = jax.random.normal(jax.random.PRNGKey(2), (4, 8))
    pre_f32 = head.preprocess(x_f32)
    assert pre_f32.dtype == jnp.float32
    assert bool(jnp.allclose(pre_f32, x_f32))

    # tiny-input short-circuit: plain astype, fused by XLA
    x_tiny = jnp.arange(15, dtype=jnp.int32).reshape(3, 5)
    pre_t = jax.block_until_ready(head.preprocess(x_tiny))
    assert pre_t.dtype == jnp.float32 and pre_t.shape == (3, 5)
    assert bool(jnp.allclose(pre_t, x_tiny.astype(jnp.float32)))

    # forward() matches the reference: it returns None
    out = head(pre)
    assert out is None

    print("KERNEL_OK")
</pallas_src>

<mosaic_0001>
module attributes {stable_mosaic.version = 11 : i64} {
  func.func @_cast_kernel(%arg0: i32, %arg1: memref<16x128xbf16, #tpu.memory_space<vmem>>, %arg2: memref<16x128xf32, #tpu.memory_space<vmem>>) attributes {dimension_semantics = [#tpu.dimension_semantics<parallel>], iteration_bounds = array<i64: 1>, scalar_prefetch = 0 : i64, scratch_operands = 0 : i64, tpu.core_type = #tpu.core_type<tc>, window_params = [{transform_indices = @transform_0, window_bounds = array<i64: 16, 128>}, {transform_indices = @transform_1, window_bounds = array<i64: 16, 128>}]} {
    %c0 = arith.constant 0 : index
    %c0_0 = arith.constant 0 : index
    %0 = vector.load %arg1[%c0, %c0_0] : memref<16x128xbf16, #tpu.memory_space<vmem>>, vector<16x128xbf16>
    %1 = arith.extf %0 : vector<16x128xbf16> to vector<16x128xf32>
    %c0_1 = arith.constant 0 : index
    %c0_2 = arith.constant 0 : index
    %2 = vector.load %arg2[%c0_1, %c0_2] : memref<16x128xf32, #tpu.memory_space<vmem>>, vector<16x128xf32>
    tpu.vector_store %arg2[%c0_1, %c0_2], %1 {strides = array<i32>} : memref<16x128xf32, #tpu.memory_space<vmem>>, vector<16x128xf32>,
    return
  }
  func.func @transform_0(%arg0: i32) -> (i32, i32) {
    %c0_i32 = arith.constant 0 : i32
    %c0_i32_0 = arith.constant 0 : i32
    return %arg0, %c0_i32 : i32, i32
  }
  func.func @transform_1(%arg0: i32) -> (i32, i32) {
    %c0_i32 = arith.constant 0 : i32
    %c0_i32_0 = arith.constant 0 : i32
    return %arg0, %c0_i32 : i32, i32
  }
}

</mosaic_0001>

<llo_original>
// kernel: tpu_custom_call.1
$region0: #{tpu_custom_call.1}
  #allocation0 [shape = 'u32[]', space=smem, size = 0x4, offset = 0x4, fixed_abs, tag = 'smem constant byte address 0x4 - core index']
  #allocation1 [shape = 'u32[144,128]{1,0:T(1,128)}', space=vmem, size = 0x12000, scoped, tag = 'internal scratch']
  %s0 = inlined_call_operand.hbm [shape: bf16[16,128], index: 0, kind: input, shape index: {}]
  %s1 = inlined_call_operand.hbm [shape: f32[16,128], index: 1, kind: output, shape index: {}]
  %s2 = sld [smem:[#allocation0]]
  $region18: #{tpu_custom_call.1} parent=0
    _
  %s4 = ssub.s32 1, %s2
  %s5 = scalar_select 0, %s4, %s2
  $region1: #{tpu_custom_call.1} parent=0
    #allocation2 [shape = 'u8[4096]{0}', space=vmem, size = 0x1000, scoped, tag = 'input window, operand 0, single buffered']
    #allocation3 [shape = 's32[1]{0}', space=sflag, size = 0x4, scoped, tag = 'scoped memory for tpu_custom_call.1']
    #allocation4 [shape = 's32[1]{0}', space=sflag, size = 0x4, scoped, tag = 'scoped memory for tpu_custom_call.1']
    #allocation5 [shape = 'u8[8192]{0}', space=vmem, size = 0x2000, scoped, tag = 'output window, operand 0, single buffered']
    %6 = vsyncpa [#allocation3], 0
    %7 = vsyncpa [#allocation4], 0
    // Predicated region
    $region2: #{tpu_custom_call.1} parent=1 // pred_check
      _
    $region3: #{tpu_custom_call.1} parent=1 // pred_check_branch
      %9 = sbr.rel (0) target = $region5
    $region4: #{tpu_custom_call.1} parent=1 // pred_region
      %s11 = ssub.s32 128, 128
      %12 = vsyncadd [#allocation3], %s11
      %s13 = sshll.u32 [#allocation2], 4
      %s14 = int_to_ptr.vmem [resolvable:$true] %s13
      %19 = dma.hbm_to_vmem [thread:$0]  %s0, 128, %s14, [#allocation3], 64, 64, 4
    $region5: #{tpu_custom_call.1} parent=1 // pred_fallthru
      _
    // Predicated region
    $region6: #{tpu_custom_call.1} parent=1 // pred_check
      _
    $region7: #{tpu_custom_call.1} parent=1 // pred_check_branch
      %21 = sbr.rel (0) target = $region9
    $region8: #{tpu_custom_call.1} parent=1 // pred_region
      %22 = dma.done [#allocation3], 128
    $region9: #{tpu_custom_call.1} parent=1 // pred_fallthru
      _
    %v23 = vld [vmem:[#allocation2] sm:$0xf]
    %v24 = vld [vmem:[#allocation2 + $0x4] sm:$0xf]
    %v25 = vunpack.c.l.bf16 %v23
    %v26 = vunpack.c.l.bf16 %v24
    %27 = vst [vmem:[#allocation5] sm:$0xff] %v25
    %28 = vst [vmem:[#allocation5 + $0x8] sm:$0xff] %v26
    // Predicated region
    $region10: #{tpu_custom_call.1} parent=1 // pred_check
      _
    $region11: #{tpu_custom_call.1} parent=1 // pred_check_branch
      %30 = sbr.rel (0) target = $region13
    $region12: #{tpu_custom_call.1} parent=1 // pred_region
      %s32 = ssub.s32 256, 256
      %33 = vsyncadd [#allocation4], %s32
      %s34 = sshll.u32 [#allocation5], 4
      %s35 = int_to_ptr.vmem [resolvable:$true] %s34
      %40 = dma.vmem_to_hbm [thread:$0]  %s35, 256, %s1, [#allocation4], 128, 128, 8
    $region13: #{tpu_custom_call.1} parent=1 // pred_fallthru
      _
    // Predicated region
    $region14: #{tpu_custom_call.1} parent=1 // pred_check
      _
    $region15: #{tpu_custom_call.1} parent=1 // pred_check_branch
      %42 = sbr.rel (0) target = $region17
    $region16: #{tpu_custom_call.1} parent=1 // pred_region
      %43 = dma.done [#allocation4], 256
    $region17: #{tpu_custom_call.1} parent=1 // pred_fallthru
      _
    %44 = vsyncpa [#allocation3], 1
    %45 = vsyncpa [#allocation4], 1

</llo_original>
